<compile_context>
chip_gen: v7x
topology: tpu7x:2x2x1
jax: 0.10.0
libtpu: 0.0.40
codegen_flags: <defaults>
</compile_context>

<pallas_src>
import jax
import jax.numpy as jnp
from jax.experimental import pallas as pl
from jax.experimental.pallas import tpu as pltpu

BN_EPS = 1e-5

# Scoped-VMEM limit we request and the portion of it we let the x slabs use
# (4x = double-buffered input + double-buffered output).  Conservative for v7x
# (64 MiB physical per TC) and trivially safe on v5e/v6e (128 MiB physical).
VMEM_LIMIT_BYTES = 32 * 1024 * 1024
SLAB_BUDGET_BYTES = 24 * 1024 * 1024


def se_kernel(x_ref, w1t_ref, b1_ref, w2t_ref, b2_ref, out_ref):
    # x_ref block: (TB, C, HW), native dtype.
    xb = x_ref[...]

    # ---- squeeze: spatial sum over the lane axis, f32 accumulation.
    #      (the 1/HW of the average pool is pre-folded into w1t on the host) ----
    pooled = jnp.sum(xb.astype(jnp.float32), axis=2)                     # (TB, C)

    # ---- excitation: 1x1 conv (BN + 1/HW folded) -> ReLU -> 1x1 conv -> sigmoid ----
    z = jnp.dot(pooled, w1t_ref[...],
                preferred_element_type=jnp.float32) + b1_ref[...]        # (TB, Cm)
    z = jnp.maximum(z, 0.0)
    z = jnp.dot(z, w2t_ref[...],
                preferred_element_type=jnp.float32) + b2_ref[...]        # (TB, C)
    scale = jax.nn.sigmoid(z)                                            # (TB, C)

    # ---- scale the slab: single large vector op in x's native dtype ----
    out_ref[...] = xb * scale.astype(xb.dtype)[:, :, None]


def _pick_tb(N, C, HW, itemsize, slab_budget_bytes=SLAB_BUDGET_BYTES):
    """Largest TB dividing N such that 4x double-buffered in+out slabs fit budget."""
    slab = C * HW * itemsize
    max_tb = max(1, slab_budget_bytes // max(1, 4 * slab))
    tb = min(N, max_tb)
    while N % tb != 0:
        tb -= 1
    return max(tb, 1)


def se_forward(x, params):
    """x: (N, C, H, W).  params = (w1, b1, gamma, beta, mu, var, w2, b2).  Returns (N, C, H, W)."""
    N, C, H, W = x.shape
    HW = H * W
    x_flat = x.reshape(N, C, HW)
    w1, b1, gamma, beta, mu, var, w2, b2 = params
    Cm = w1.shape[0]

    # ---- host-side: fold BN (eval) and the 1/HW pool factor into conv1,
    #      pre-transpose both weights so the kernel does plain (M,K)@(K,N) ----
    inv_std = gamma * jax.lax.rsqrt(var + BN_EPS)                        # (1, Cm)
    w1t = ((w1 * inv_std[0][:, None]).T * (1.0 / HW)).astype(jnp.float32)  # (C, Cm)
    b1f = ((b1 - mu) * inv_std + beta).astype(jnp.float32)               # (1, Cm)
    w2t = w2.T.astype(jnp.float32)                                       # (Cm, C)
    b2r = b2.reshape(1, C).astype(jnp.float32)                           # (1, C)

    TB = _pick_tb(N, C, HW, x.dtype.itemsize)
    full = lambda n: (0, 0)

    out = pl.pallas_call(
        se_kernel,
        out_shape=jax.ShapeDtypeStruct((N, C, HW), x.dtype),
        grid_spec=pl.GridSpec(
            grid=(N // TB,),
            in_specs=[
                pl.BlockSpec((TB, C, HW), lambda n: (n, 0, 0)),  # x slab
                pl.BlockSpec((C, Cm), full),                     # w1 (BN + 1/HW folded, transposed)
                pl.BlockSpec((1, Cm), full),                     # b1 (BN folded)
                pl.BlockSpec((Cm, C), full),                     # w2 (transposed)
                pl.BlockSpec((1, C), full),                      # b2
            ],
            out_specs=pl.BlockSpec((TB, C, HW), lambda n: (n, 0, 0)),
        ),
        compiler_params=pltpu.CompilerParams(
            dimension_semantics=("parallel",),
            vmem_limit_bytes=VMEM_LIMIT_BYTES,
        ),
    )(x_flat, w1t, b1f, w2t, b2r)
    return out.reshape(N, C, H, W)


def se_reference(x, params):
    """Pure-JAX reference matching the PyTorch SE forward (BN eval mode)."""
    w1, b1, gamma, beta, mu, var, w2, b2 = params
    y = jnp.mean(x, axis=(2, 3))                                   # (N, C)
    y = y @ w1.T + b1[0]                                           # (N, Cm)
    y = (y - mu[0]) / jnp.sqrt(var[0] + BN_EPS) * gamma[0] + beta[0]
    y = jnp.maximum(y, 0.0)
    y = y @ w2.T + b2[:, 0]                                        # (N, C)
    y = jax.nn.sigmoid(y)
    return x * y[:, :, None, None]


def init_params(key, in_channels, channels, se_ratio=12):
    mid = channels // se_ratio
    ks = jax.random.split(key, 8)
    w1 = jax.random.normal(ks[0], (mid, in_channels), jnp.float32) * 0.2
    b1 = jax.random.normal(ks[1], (1, mid), jnp.float32) * 0.1
    gamma = 1.0 + 0.1 * jax.random.normal(ks[2], (1, mid), jnp.float32)
    beta = 0.1 * jax.random.normal(ks[3], (1, mid), jnp.float32)
    mu = 0.1 * jax.random.normal(ks[4], (1, mid), jnp.float32)
    var = jnp.abs(jax.random.normal(ks[5], (1, mid), jnp.float32)) + 0.5
    w2 = jax.random.normal(ks[6], (channels, mid), jnp.float32) * 0.2
    b2 = jax.random.normal(ks[7], (channels, 1), jnp.float32) * 0.1
    return (w1, b1, gamma, beta, mu, var, w2, b2)


if __name__ == "__main__":
    key = jax.random.PRNGKey(0)
    k_x, k_p = jax.random.split(key)

    # in_channels == channels (required by the x * y broadcast in the module).
    N, C, H, W = 2, 24, 16, 16
    SE_RATIO = 12

    x = jax.random.normal(k_x, (N, C, H, W), jnp.float32)
    params = init_params(k_p, C, C, SE_RATIO)

    out = se_forward(x, params)
    out = jax.block_until_ready(out)

    ref = se_reference(x, params)
    assert out.shape == x.shape and out.dtype == x.dtype
    assert jnp.allclose(out, ref, atol=1e-5, rtol=1e-5), "mismatch vs reference"

    print("KERNEL_OK")
</pallas_src>

<mosaic_0001>
module attributes {stable_mosaic.version = 11 : i64} {
  func.func @se_kernel(%arg0: i32, %arg1: memref<2x24x256xf32, #tpu.memory_space<vmem>>, %arg2: memref<24x2xf32, #tpu.memory_space<vmem>>, %arg3: memref<1x2xf32, #tpu.memory_space<vmem>>, %arg4: memref<2x24xf32, #tpu.memory_space<vmem>>, %arg5: memref<1x24xf32, #tpu.memory_space<vmem>>, %arg6: memref<2x24x256xf32, #tpu.memory_space<vmem>>) attributes {dimension_semantics = [#tpu.dimension_semantics<parallel>], iteration_bounds = array<i64: 1>, scalar_prefetch = 0 : i64, scratch_operands = 0 : i64, tpu.core_type = #tpu.core_type<tc>, window_params = [{transform_indices = @transform_0, window_bounds = array<i64: 2, 24, 256>}, {pipeline_mode = #tpu.pipeline_mode<synchronous>, transform_indices = @transform_1, window_bounds = array<i64: 24, 2>}, {pipeline_mode = #tpu.pipeline_mode<synchronous>, transform_indices = @transform_2, window_bounds = array<i64: 1, 2>}, {pipeline_mode = #tpu.pipeline_mode<synchronous>, transform_indices = @transform_3, window_bounds = array<i64: 2, 24>}, {pipeline_mode = #tpu.pipeline_mode<synchronous>, transform_indices = @transform_4, window_bounds = array<i64: 1, 24>}, {transform_indices = @transform_5, window_bounds = array<i64: 2, 24, 256>}]} {
    %c0 = arith.constant 0 : index
    %c0_0 = arith.constant 0 : index
    %c0_1 = arith.constant 0 : index
    %0 = vector.load %arg1[%c0, %c0_0, %c0_1] : memref<2x24x256xf32, #tpu.memory_space<vmem>>, vector<2x24x256xf32>
    %cst = arith.constant dense<0.000000e+00> : vector<2x24xf32>
    %1 = vector.multi_reduction <add>, %0, %cst [2] : vector<2x24x256xf32> to vector<2x24xf32>
    %c0_2 = arith.constant 0 : index
    %c0_3 = arith.constant 0 : index
    %2 = vector.load %arg2[%c0_2, %c0_3] : memref<24x2xf32, #tpu.memory_space<vmem>>, vector<24x2xf32>
    %cst_4 = arith.constant dense<0.000000e+00> : vector<2x2xf32>
    %3 = tpu.matmul %1, %2, %cst_4 {dimension_numbers = #tpu.dot_dimension_numbers<[1], [0], [0], [1], [0, 0, 1, 1], [], []>} : vector<2x24xf32>, vector<24x2xf32>, vector<2x2xf32> -> vector<2x2xf32>
    %c0_5 = arith.constant 0 : index
    %c0_6 = arith.constant 0 : index
    %4 = vector.load %arg3[%c0_5, %c0_6] : memref<1x2xf32, #tpu.memory_space<vmem>>, vector<1x2xf32>
    %5 = vector.broadcast %4 : vector<1x2xf32> to vector<2x2xf32>
    %6 = arith.addf %3, %5 : vector<2x2xf32>
    %cst_7 = arith.constant 0.000000e+00 : f32
    %7 = vector.broadcast %cst_7 : f32 to vector<2x2xf32>
    %8 = arith.maximumf %6, %7 : vector<2x2xf32>
    %c0_8 = arith.constant 0 : index
    %c0_9 = arith.constant 0 : index
    %9 = vector.load %arg4[%c0_8, %c0_9] : memref<2x24xf32, #tpu.memory_space<vmem>>, vector<2x24xf32>
    %cst_10 = arith.constant dense<0.000000e+00> : vector<2x24xf32>
    %10 = tpu.matmul %8, %9, %cst_10 {dimension_numbers = #tpu.dot_dimension_numbers<[1], [0], [0], [1], [0, 0, 1, 1], [], []>} : vector<2x2xf32>, vector<2x24xf32>, vector<2x24xf32> -> vector<2x24xf32>
    %c0_11 = arith.constant 0 : index
    %c0_12 = arith.constant 0 : index
    %11 = vector.load %arg5[%c0_11, %c0_12] : memref<1x24xf32, #tpu.memory_space<vmem>>, vector<1x24xf32>
    %12 = vector.broadcast %11 : vector<1x24xf32> to vector<2x24xf32>
    %13 = arith.addf %10, %12 : vector<2x24xf32>
    %14 = arith.negf %13 : vector<2x24xf32>
    %15 = math.exp %14 : vector<2x24xf32>
    %cst_13 = arith.constant 1.000000e+00 : f32
    %16 = vector.broadcast %cst_13 : f32 to vector<2x24xf32>
    %17 = arith.addf %16, %15 : vector<2x24xf32>
    %18 = arith.divf %16, %17 : vector<2x24xf32>
    %19 = vector.shape_cast %18 : vector<2x24xf32> to vector<2x24x1xf32>
    %20 = vector.broadcast %19 : vector<2x24x1xf32> to vector<2x24x256xf32>
    %21 = arith.mulf %0, %20 : vector<2x24x256xf32>
    %c0_14 = arith.constant 0 : index
    %c0_15 = arith.constant 0 : index
    %c0_16 = arith.constant 0 : index
    %22 = vector.load %arg6[%c0_14, %c0_15, %c0_16] : memref<2x24x256xf32, #tpu.memory_space<vmem>>, vector<2x24x256xf32>
    tpu.vector_store %arg6[%c0_14, %c0_15, %c0_16], %21 {strides = array<i32>} : memref<2x24x256xf32, #tpu.memory_space<vmem>>, vector<2x24x256xf32>,
    return
  }
  func.func @transform_0(%arg0: i32) -> (i32, i32, i32) {
    %c0_i32 = arith.constant 0 : i32
    %c0_i32_0 = arith.constant 0 : i32
    %c0_i32_1 = arith.constant 0 : i32
    return %arg0, %c0_i32, %c0_i32_0 : i32, i32, i32
  }
  func.func @transform_1(%arg0: i32) -> (i32, i32) {
    %c0_i32 = arith.constant 0 : i32
    %c0_i32_0 = arith.constant 0 : i32
    %c0_i32_1 = arith.constant 0 : i32
    return %c0_i32, %c0_i32_0 : i32, i32
  }
  func.func @transform_2(%arg0: i32) -> (i32, i32) {
    %c0_i32 = arith.constant 0 : i32
    %c0_i32_0 = arith.constant 0 : i32
    %c0_i32_1 = arith.constant 0 : i32
    return %c0_i32, %c0_i32_0 : i32, i32
  }
  func.func @transform_3(%arg0: i32) -> (i32, i32) {
    %c0_i32 = arith.constant 0 : i32
    %c0_i32_0 = arith.constant 0 : i32
    %c0_i32_1 = arith.constant 0 : i32
    return %c0_i32, %c0_i32_0 : i32, i32
  }
  func.func @transform_4(%arg0: i32) -> (i32, i32) {
    %c0_i32 = arith.constant 0 : i32
    %c0_i32_0 = arith.constant 0 : i32
    %c0_i32_1 = arith.constant 0 : i32
    return %c0_i32, %c0_i32_0 : i32, i32
  }
  func.func @transform_5(%arg0: i32) -> (i32, i32, i32) {
    %c0_i32 = arith.constant 0 : i32
    %c0_i32_0 = arith.constant 0 : i32
    %c0_i32_1 = arith.constant 0 : i32
    return %arg0, %c0_i32, %c0_i32_0 : i32, i32, i32
  }
}

</mosaic_0001>

<llo_original>
// kernel: tpu_custom_call.1
$region0: #{tpu_custom_call.1}
  #allocation0 [shape = 'u32[]', space=smem, size = 0x4, offset = 0x4, fixed_abs, tag = 'smem constant byte address 0x4 - core index']
  #allocation1 [shape = 'u32[144,128]{1,0:T(1,128)}', space=vmem, size = 0x12000, scoped, tag = 'internal scratch']
  %s0 = inlined_call_operand.hbm [shape: f32[2,24,256], index: 0, kind: input, shape index: {}]
  %s1 = inlined_call_operand.vmem [shape: f32[24,2], index: 1, kind: input, shape index: {}]
  %s2 = inlined_call_operand.vmem [shape: f32[1,2], index: 2, kind: input, shape index: {}]
  %s3 = inlined_call_operand.vmem [shape: f32[2,24], index: 3, kind: input, shape index: {}]
  %s4 = inlined_call_operand.vmem [shape: f32[1,24], index: 4, kind: input, shape index: {}]
  %s5 = inlined_call_operand.hbm [shape: f32[2,24,256], index: 5, kind: output, shape index: {}]
  %s6 = sld [smem:[#allocation0]]
  $region34: #{tpu_custom_call.1} parent=0
    _
  %s8 = ssub.s32 1, %s6
  %s9 = scalar_select 0, %s8, %s6
  $region1: #{tpu_custom_call.1} parent=0
    #allocation2 [shape = 'u8[49152]{0}', space=vmem, size = 0xc000, scoped, tag = 'input window, operand 0, single buffered']
    #allocation3 [shape = 's32[1]{0}', space=sflag, size = 0x4, scoped, tag = 'scoped memory for tpu_custom_call.1']
    #allocation4 [shape = 's32[1]{0}', space=sflag, size = 0x4, scoped, tag = 'scoped memory for tpu_custom_call.1']
    #allocation5 [shape = 'u8[49152]{0}', space=vmem, size = 0xc000, scoped, tag = 'output window, operand 0, single buffered']
    %10 = vsyncpa [#allocation3], 0
    %11 = vsyncpa [#allocation4], 0
    // Predicated region
    $region2: #{tpu_custom_call.1} parent=1 // pred_check
      _
    $region3: #{tpu_custom_call.1} parent=1 // pred_check_branch
      %13 = sbr.rel (0) target = $region5
    $region4: #{tpu_custom_call.1} parent=1 // pred_region
      %s15 = ssub.s32 1536, 1536
      %16 = vsyncadd [#allocation3], %s15
      %s17 = sshll.u32 [#allocation2], 4
      %s18 = int_to_ptr.vmem [resolvable:$true] %s17
      %23 = dma.hbm_to_vmem [thread:$0]  %s0, 1536, %s18, [#allocation3], 256, 256, 16
    $region5: #{tpu_custom_call.1} parent=1 // pred_fallthru
      _
    // Predicated region
    $region6: #{tpu_custom_call.1} parent=1 // pred_check
      _
    $region7: #{tpu_custom_call.1} parent=1 // pred_check_branch
      %25 = sbr.rel (0) target = $region9
    $region8: #{tpu_custom_call.1} parent=1 // pred_region
      _
    $region9: #{tpu_custom_call.1} parent=1 // pred_fallthru
      _
    // Predicated region
    $region10: #{tpu_custom_call.1} parent=1 // pred_check
      _
    $region11: #{tpu_custom_call.1} parent=1 // pred_check_branch
      %27 = sbr.rel (0) target = $region13
    $region12: #{tpu_custom_call.1} parent=1 // pred_region
      _
    $region13: #{tpu_custom_call.1} parent=1 // pred_fallthru
      _
    // Predicated region
    $region14: #{tpu_custom_call.1} parent=1 // pred_check
      _
    $region15: #{tpu_custom_call.1} parent=1 // pred_check_branch
      %29 = sbr.rel (0) target = $region17
    $region16: #{tpu_custom_call.1} parent=1 // pred_region
      _
    $region17: #{tpu_custom_call.1} parent=1 // pred_fallthru
      _
    // Predicated region
    $region18: #{tpu_custom_call.1} parent=1 // pred_check
      _
    $region19: #{tpu_custom_call.1} parent=1 // pred_check_branch
      %31 = sbr.rel (0) target = $region21
    $region20: #{tpu_custom_call.1} parent=1 // pred_region
      _
    $region21: #{tpu_custom_call.1} parent=1 // pred_fallthru
      _
    // Predicated region
    $region22: #{tpu_custom_call.1} parent=1 // pred_check
      _
    $region23: #{tpu_custom_call.1} parent=1 // pred_check_branch
      %33 = sbr.rel (0) target = $region25
    $region24: #{tpu_custom_call.1} parent=1 // pred_region
      %34 = dma.done [#allocation3], 1536
    $region25: #{tpu_custom_call.1} parent=1 // pred_fallthru
      _
    %v35 = vld [vmem:[#allocation2] sm:$0xff]
    %v36 = vld [vmem:[#allocation2 + $0x8] sm:$0xff]
    %v37 = vld [vmem:[#allocation2 + $0x10] sm:$0xff]
    %v38 = vld [vmem:[#allocation2 + $0x18] sm:$0xff]
    %v39 = vld [vmem:[#allocation2 + $0x20] sm:$0xff]
    %v40 = vld [vmem:[#allocation2 + $0x28] sm:$0xff]
    %v41 = vld [vmem:[#allocation2 + $0x30] sm:$0xff]
    %v42 = vld [vmem:[#allocation2 + $0x38] sm:$0xff]
    %v43 = vld [vmem:[#allocation2 + $0x40] sm:$0xff]
    %v44 = vld [vmem:[#allocation2 + $0x48] sm:$0xff]
    %v45 = vld [vmem:[#allocation2 + $0x50] sm:$0xff]
    %v46 = vld [vmem:[#allocation2 + $0x58] sm:$0xff]
    %v47 = vadd.f32 %v35, %v36
    %48 = vadd.xlane.f32.xlu0 %v47
    %v49 = vpop.xlane.xlu0 %48
    %v50 = vadd.f32 %v37, %v38
    %51 = vadd.xlane.f32.xlu0 %v50
    %v52 = vpop.xlane.xlu0 %51
    %v53 = vadd.f32 %v39, %v40
    %54 = vadd.xlane.f32.xlu0 %v53
    %v55 = vpop.xlane.xlu0 %54
    %v56 = vadd.f32 %v41, %v42
    %57 = vadd.xlane.f32.xlu0 %v56
    %v58 = vpop.xlane.xlu0 %57
    %v59 = vadd.f32 %v43, %v44
    %60 = vadd.xlane.f32.xlu0 %v59
    %v61 = vpop.xlane.xlu0 %60
    %v62 = vadd.f32 %v45, %v46
    %63 = vadd.xlane.f32.xlu0 %v62
    %v64 = vpop.xlane.xlu0 %63
    %v65 = vld [vmem:[%s1] sm:$0xff]
    %v66 = vld [vmem:[%s1 + $0x8] sm:$0xff]
    %v67 = vld [vmem:[%s1 + $0x10] sm:$0xff]
    %v68 = vld [vmem:[%s2] sm:$0x1]
    %v70 = vlaneseq
    %v71 = vshrl.u32 %v70, 7
    %v72 = vsub.s32 0, %v71
    %v73 = vrot.slane %v68, %v72
    %v81 = vlaneseq
    %v82 = vand.u32 %v81, 127
    %v83 = vlaneseq
    %v84 = vshrl.u32 %v83, 7
    %v85 = vsub.s32 %v82, %v84
    %v86 = vrot.slane %v49, %v85
    %v87 = vadd.s32 %v82, 4294967288
    %v88 = vlaneseq
    %v89 = vshrl.u32 %v88, 7
    %v90 = vsub.s32 %v87, %v89
    %v91 = vrot.slane %v52, %v90
    %vm92 = vcmask 130112
    %v93 = vsel %vm92, %v91, %v86
    %v94 = vadd.s32 %v82, 4294967280
    %v95 = vlaneseq
    %v96 = vshrl.u32 %v95, 7
    %v97 = vsub.s32 %v94, %v96
    %v98 = vrot.slane %v55, %v97
    %vm99 = vcmask 195712
    %v100 = vsel %vm99, %v98, %v93
    %v101 = vlaneseq
    %v102 = vshrl.u32 %v101, 7
    %v103 = vsub.s32 %v82, %v102
    %v104 = vrot.slane %v58, %v103
    %v105 = vlaneseq
    %v106 = vshrl.u32 %v105, 7
    %v107 = vsub.s32 %v87, %v106
    %v108 = vrot.slane %v61, %v107
    %v109 = vsel %vm92, %v108, %v104
    %v110 = vlaneseq
    %v111 = vshrl.u32 %v110, 7
    %v112 = vsub.s32 %v94, %v111
    %v113 = vrot.slane %v64, %v112
    %v114 = vsel %vm99, %v113, %v109
    %vm115 = vcmask 1041409
    %v116 = vsel %vm115, %v114, %v100
    %vm117 = vcmask 195584
    %v118 = vsel %vm117, %v116, 0
    %120 = vmatprep.subr.mxu0 0.0
    %121 = vmatpush1.msra.mxu0 %v65
    %122 = vmatprep.subr.mxu0 0.0
    %123 = vmatpush1.msra.mxu0 %v66
    %124 = vmatprep.subr.mxu0 0.0
    %125 = vmatpush1.msra.mxu0 %v67
    %126 = vmatprep.subr.mxu0 0.0
    %127 = vmatpush1.msra.mxu0 0.0
    %128 = vmatprep.subr.mxu0 0.0
    %129 = vmatpush1.msra.mxu0 0.0
    %130 = vmatprep.subr.mxu0 0.0
    %131 = vmatpush1.msra.mxu0 0.0
    %132 = vmatprep.subr.mxu0 0.0
    %133 = vmatpush1.msra.mxu0 0.0
    %134 = vmatprep.subr.mxu0 0.0
    %135 = vmatpush1.msra.mxu0 0.0
    %136 = vmatprep.subr.mxu0 0.0
    %137 = vmatpush1.msra.mxu0 0.0
    %138 = vmatprep.subr.mxu0 0.0
    %139 = vmatpush1.msra.mxu0 0.0
    %140 = vmatprep.subr.mxu0 0.0
    %141 = vmatpush1.msra.mxu0 0.0
    %142 = vmatprep.subr.mxu0 0.0
    %143 = vmatpush1.msra.mxu0 0.0
    %144 = vmatprep.subr.mxu0 0.0
    %145 = vmatpush1.msra.mxu0 0.0
    %146 = vmatprep.subr.mxu0 0.0
    %147 = vmatpush1.msra.mxu0 0.0
    %148 = vmatprep.subr.mxu0 0.0
    %149 = vmatpush1.msra.mxu0 0.0
    %150 = vmatprep.subr.mxu0 0.0
    %151 = vmatpush1.msra.mxu0 0.0
    %152 = vmatprep.subr.mxu0 0.0
    %153 = vmatpush1.msra.mxu0 0.0
    %154 = vmatprep.subr.mxu0 0.0
    %155 = vmatpush1.msra.mxu0 0.0
    %156 = vmatprep.subr.mxu0 0.0
    %157 = vmatpush1.msra.mxu0 0.0
    %158 = vmatprep.subr.mxu0 0.0
    %159 = vmatpush1.msra.mxu0 0.0
    %160 = vmatprep.subr.mxu0 0.0
    %161 = vmatpush1.msra.mxu0 0.0
    %162 = vmatprep.subr.mxu0 0.0
    %163 = vmatpush1.msra.mxu0 0.0
    %164 = vmatprep.subr.mxu0 0.0
    %165 = vmatpush1.msra.mxu0 0.0
    %166 = vmatprep.subr.mxu0 0.0
    %167 = vmatpush1.msra.mxu0 0.0
    %168 = vmatprep.subr.mxu0 0.0
    %169 = vmatpush1.msra.mxu0 0.0
    %170 = vmatprep.subr.mxu0 0.0
    %171 = vmatpush1.msra.mxu0 0.0
    %172 = vmatprep.subr.mxu0 0.0
    %173 = vmatpush1.msra.mxu0 0.0
    %174 = vmatprep.subr.mxu0 0.0
    %175 = vmatpush1.msra.mxu0 0.0
    %176 = vmatprep.subr.mxu0 0.0
    %177 = vmatpush1.msra.mxu0 0.0
    %178 = vmatprep.subr.mxu0 0.0
    %179 = vmatpush1.msra.mxu0 0.0
    %180 = vmatprep.subr.mxu0 0.0
    %181 = vmatpush1.msra.mxu0 0.0
    %182 = vmatprep.subr.mxu0 0.0
    %183 = vmatpush1.msra.mxu0 0.0
    %184 = vmatprep.mubr.f32.mxu0 0.0
    %185 = vmatmul.mubr.f32.gmra.mrb[0].mxu0 %v118
    %v186 = vpop.f32.mrb[0].mxu0
    %v187 = vadd.f32 %v73, %v186
    %v188 = vpop.f32.mrb[0].mxu0
    %189 = vdwg.mxu0
    %v190 = vmax.f32 %v187, 0.0
    %v191 = vld [vmem:[%s3] sm:$0x3]
    %v192 = vld [vmem:[%s4] sm:$0x1]
    %v194 = vlaneseq
    %v195 = vshrl.u32 %v194, 7
    %v196 = vsub.s32 0, %v195
    %v197 = vrot.slane %v192, %v196
    %vm199 = vcmask 15360
    %v201 = vsel %vm199, %v190, 0
    %vm203 = vcmask 1041408
    %v205 = vsel %vm203, %v191, 0
    %207 = vmatprep.subr.mxu0 0.0
    %208 = vmatpush1.msra.mxu0 %v205
    %209 = vmatprep.subr.mxu0 0.0
    %210 = vmatpush1.msra.mxu0 0.0
    %211 = vmatprep.subr.mxu0 0.0
    %212 = vmatpush1.msra.mxu0 0.0
    %213 = vmatprep.subr.mxu0 0.0
    %214 = vmatpush1.msra.mxu0 0.0
    %215 = vmatprep.subr.mxu0 0.0
    %216 = vmatpush1.msra.mxu0 0.0
    %217 = vmatprep.subr.mxu0 0.0
    %218 = vmatpush1.msra.mxu0 0.0
    %219 = vmatprep.subr.mxu0 0.0
    %220 = vmatpush1.msra.mxu0 0.0
    %221 = vmatprep.subr.mxu0 0.0
    %222 = vmatpush1.msra.mxu0 0.0
    %223 = vmatprep.subr.mxu0 0.0
    %224 = vmatpush1.msra.mxu0 0.0
    %225 = vmatprep.subr.mxu0 0.0
    %226 = vmatpush1.msra.mxu0 0.0
    %227 = vmatprep.subr.mxu0 0.0
    %228 = vmatpush1.msra.mxu0 0.0
    %229 = vmatprep.subr.mxu0 0.0
    %230 = vmatpush1.msra.mxu0 0.0
    %231 = vmatprep.subr.mxu0 0.0
    %232 = vmatpush1.msra.mxu0 0.0
    %233 = vmatprep.subr.mxu0 0.0
    %234 = vmatpush1.msra.mxu0 0.0
    %235 = vmatprep.subr.mxu0 0.0
    %236 = vmatpush1.msra.mxu0 0.0
    %237 = vmatprep.subr.mxu0 0.0
    %238 = vmatpush1.msra.mxu0 0.0
    %239 = vmatprep.subr.mxu0 0.0
    %240 = vmatpush1.msra.mxu0 0.0
    %241 = vmatprep.subr.mxu0 0.0
    %242 = vmatpush1.msra.mxu0 0.0
    %243 = vmatprep.subr.mxu0 0.0
    %244 = vmatpush1.msra.mxu0 0.0
    %245 = vmatprep.subr.mxu0 0.0
    %246 = vmatpush1.msra.mxu0 0.0
    %247 = vmatprep.subr.mxu0 0.0
    %248 = vmatpush1.msra.mxu0 0.0
    %249 = vmatprep.subr.mxu0 0.0
    %250 = vmatpush1.msra.mxu0 0.0
    %251 = vmatprep.subr.mxu0 0.0
    %252 = vmatpush1.msra.mxu0 0.0
    %253 = vmatprep.subr.mxu0 0.0
    %254 = vmatpush1.msra.mxu0 0.0
    %255 = vmatprep.subr.mxu0 0.0
    %256 = vmatpush1.msra.mxu0 0.0
    %257 = vmatprep.subr.mxu0 0.0
    %258 = vmatpush1.msra.mxu0 0.0
    %259 = vmatprep.subr.mxu0 0.0
    %260 = vmatpush1.msra.mxu0 0.0
    %261 = vmatprep.subr.mxu0 0.0
    %262 = vmatpush1.msra.mxu0 0.0
    %263 = vmatprep.subr.mxu0 0.0
    %264 = vmatpush1.msra.mxu0 0.0
    %265 = vmatprep.subr.mxu0 0.0
    %266 = vmatpush1.msra.mxu0 0.0
    %267 = vmatprep.subr.mxu0 0.0
    %268 = vmatpush1.msra.mxu0 0.0
    %269 = vmatprep.subr.mxu0 0.0
    %270 = vmatpush1.msra.mxu0 0.0
    %271 = vmatprep.mubr.f32.mxu0 0.0
    %272 = vmatmul.mubr.f32.gmra.mrb[0].mxu0 %v201
    %v273 = vpop.f32.mrb[0].mxu0
    %v274 = vadd.f32 %v197, %v273
    %v275 = vpop.f32.mrb[0].mxu0
    %276 = vdwg.mxu0
    %v277 = vxor.u32 %v274, 2147483648
    %v278 = vmul.f32 %v277, 1.442695
    %v279 = vpow.pop %v278
    %v280 = vadd.f32 %v279, 1.0
    %v281 = vrcp.pop %v280
    %v282 = vmul.f32 1.0, %v281
    %v283 = vlaneseq
    %v284 = vshrl.u32 %v283, 7
    %v285 = vsub.s32 0, %v284
    %v286 = vrot.slane %v282, %v285
    %288 = vbcast.lane.b32.xlu0 %v286, 256
    %v289 = vpop.permute.xlu0 %288
    %s291 = sor.u32 256, 8
    %292 = vbcast.lane.b32.xlu0 %v286, %s291
    %v293 = vpop.permute.xlu0 %292
    %s295 = sor.u32 256, 16
    %296 = vbcast.lane.b32.xlu0 %v286, %s295
    %v297 = vpop.permute.xlu0 %296
    %v298 = vlaneseq
    %v299 = vshrl.u32 %v298, 7
    %v300 = vsub.s32 1, %v299
    %v301 = vrot.slane %v282, %v300
    %303 = vbcast.lane.b32.xlu0 %v301, 256
    %v304 = vpop.permute.xlu0 %303
    %s306 = sor.u32 256, 8
    %307 = vbcast.lane.b32.xlu0 %v301, %s306
    %v308 = vpop.permute.xlu0 %307
    %s310 = sor.u32 256, 16
    %311 = vbcast.lane.b32.xlu0 %v301, %s310
    %v312 = vpop.permute.xlu0 %311
    %v313 = vmul.f32 %v35, %v289
    %v314 = vmul.f32 %v36, %v289
    %v315 = vmul.f32 %v37, %v293
    %v316 = vmul.f32 %v38, %v293
    %v317 = vmul.f32 %v39, %v297
    %v318 = vmul.f32 %v40, %v297
    %v319 = vmul.f32 %v41, %v304
    %v320 = vmul.f32 %v42, %v304
    %v321 = vmul.f32 %v43, %v308
    %v322 = vmul.f32 %v44, %v308
    %v323 = vmul.f32 %v45, %v312
    %v324 = vmul.f32 %v46, %v312
    %325 = vst [vmem:[#allocation5] sm:$0xff] %v313
    %326 = vst [vmem:[#allocation5 + $0x8] sm:$0xff] %v314
    %327 = vst [vmem:[#allocation5 + $0x10] sm:$0xff] %v315
    %328 = vst [vmem:[#allocation5 + $0x18] sm:$0xff] %v316
    %329 = vst [vmem:[#allocation5 + $0x20] sm:$0xff] %v317
    %330 = vst [vmem:[#allocation5 + $0x28] sm:$0xff] %v318
    %331 = vst [vmem:[#allocation5 + $0x30] sm:$0xff] %v319
    %332 = vst [vmem:[#allocation5 + $0x38] sm:$0xff] %v320
    %333 = vst [vmem:[#allocation5 + $0x40] sm:$0xff] %v321
    %334 = vst [vmem:[#allocation5 + $0x48] sm:$0xff] %v322
    %335 = vst [vmem:[#allocation5 + $0x50] sm:$0xff] %v323
    %336 = vst [vmem:[#allocation5 + $0x58] sm:$0xff] %v324
    // Predicated region
    $region26: #{tpu_custom_call.1} parent=1 // pred_check
      _
    $region27: #{tpu_custom_call.1} parent=1 // pred_check_branch
      %338 = sbr.rel (0) target = $region29
    $region28: #{tpu_custom_call.1} parent=1 // pred_region
      %s340 = ssub.s32 1536, 1536
      %341 = vsyncadd [#allocation4], %s340
      %s342 = sshll.u32 [#allocation5], 4
      %s343 = int_to_ptr.vmem [resolvable:$true] %s342
      %348 = dma.vmem_to_hbm [thread:$0]  %s343, 1536, %s5, [#allocation4], 256, 256, 16
    $region29: #{tpu_custom_call.1} parent=1 // pred_fallthru
      _
    // Predicated region
    $region30: #{tpu_custom_call.1} parent=1 // pred_check
      _
    $region31: #{tpu_custom_call.1} parent=1 // pred_check_branch
      %350 = sbr.rel (0) target = $region33
    $region32: #{tpu_custom_call.1} parent=1 // pred_region
      %351 = dma.done [#allocation4], 1536
    $region33: #{tpu_custom_call.1} parent=1 // pred_fallthru
      _
    %352 = vsyncpa [#allocation3], 1
    %353 = vsyncpa [#allocation4], 1

</llo_original>
